<compile_context>
chip_gen: v7x
topology: tpu7x:2x2x1
jax: 0.10.0
libtpu: 0.0.40
codegen_flags: <defaults>
</compile_context>

<pallas_src>
import functools

import jax
import jax.numpy as jnp
from jax.experimental import pallas as pl
from jax.experimental.pallas import tpu as pltpu  # noqa: F401  (kept for TPU-specific tuning hooks)


# ----------------------------- Pallas kernel ------------------------------ #
def _fused_gnn_kernel(a_ref, x_ref, w0_ref, wr_ref, gb_ref, o_ref, *,
                      num_layers: int, eps: float = 1e-5):
    """Entire L-layer message-passing forward in one kernel invocation.

    a_ref:  [N, N]                  row-normalized adjacency, bf16
    x_ref:  [N, Din]                input node features, bf16
    w0_ref: [Din, Dout]             layer-0 weight, bf16
    wr_ref: [max(L-1,1), Dout, Dout] layers 1..L-1 weights, bf16
    gb_ref: [L, 2, Dout]            stacked BatchNorm (gamma; beta), f32
    o_ref:  [N, Dout]               final node embeddings (JK='last')
    """
    a = a_ref[...]                     # resident for all layers
    h = x_ref[...]                     # bf16 node state carried across layers

    for layer in range(num_layers):    # static unroll: scheduler sees all layers
        w = w0_ref[...] if layer == 0 else wr_ref[layer - 1]

        # Message aggregation + linear transform, bf16 operands / f32 accum.
        # (A @ H) first so the N*N contraction uses the smaller feature dim
        # at layer 0 (Din < Dout).
        msg = jnp.dot(a, h, preferred_element_type=jnp.float32)
        z = jnp.dot(msg.astype(jnp.bfloat16), w,
                    preferred_element_type=jnp.float32)
        # NOTE: per-layer linear bias omitted - with training-mode BatchNorm
        # (batch statistics computed below) a per-feature constant is exactly
        # cancelled by the mean subtraction (redundant with beta).

        # BatchNorm1d over the node axis (training-mode stats, biased var), f32.
        gb_l = gb_ref[layer]           # [2, Dout]
        gamma = gb_l[0:1, :]
        beta = gb_l[1:2, :]
        mean = jnp.mean(z, axis=0, keepdims=True)
        centered = z - mean
        var = jnp.mean(centered * centered, axis=0, keepdims=True)
        h_bn = centered * (jax.lax.rsqrt(var + eps) * gamma) + beta

        if layer != num_layers - 1:
            # ReLU, then carry in bf16 (matmuls consume bf16 anyway).
            h = jnp.maximum(h_bn, 0.0).astype(jnp.bfloat16)
        else:
            # JK='last': the last layer's pre-ReLU, post-BN embedding.
            o_ref[...] = h_bn.astype(o_ref.dtype)


# ------------------------------ host wrapper ------------------------------ #
def multilayer_message_passing_forward(a_hat, x, params, *, jk="last"):
    """Mirrors MultiLayerMessagePassing.forward (drop_ratio=None, JK='last')."""
    if jk != "last":
        # TODO(synk): only the module-default JK='last' is fused; 'sum'/'mean'
        # would additionally accumulate h across layers inside the loop.
        raise NotImplementedError("fused kernel implements JK='last' only")

    n, inp_dim = x.shape
    out_dim = params[0][0].shape[1]
    num_layers = len(params)

    a_bf16 = a_hat.astype(jnp.bfloat16)                          # [N, N]
    x_bf16 = x.astype(jnp.bfloat16)                              # [N, Din]
    w0 = params[0][0].astype(jnp.bfloat16)                       # [Din, Dout]
    if num_layers > 1:
        w_rest = jnp.stack([w for (w, _, _) in params[1:]]
                           ).astype(jnp.bfloat16)                # [L-1, Dout, Dout]
    else:
        # dummy (never read by the kernel when num_layers == 1)
        w_rest = jnp.zeros((1, out_dim, out_dim), jnp.bfloat16)
    gb_stack = jnp.stack(
        [jnp.stack([g.reshape(out_dim), b.reshape(out_dim)]) for (_, g, b) in params]
    ).astype(jnp.float32)                                        # [L, 2, Dout]

    kernel = functools.partial(_fused_gnn_kernel, num_layers=num_layers)

    # No grid: the whole L-layer stack is a single invocation; every operand
    # (A ~32 KiB, x ~8 KiB, W stack ~96 KiB, BN params ~3 KiB) is one
    # VMEM-resident block, so there is no per-layer grid-step or DMA overhead.
    return pl.pallas_call(
        kernel,
        out_shape=jax.ShapeDtypeStruct((n, out_dim), x.dtype),
    )(a_bf16, x_bf16, w0, w_rest, gb_stack)


# --------------------------- model construction --------------------------- #
def init_params(key, num_layers, inp_dim, out_dim):
    params = []
    for layer in range(num_layers):
        din = inp_dim if layer == 0 else out_dim
        key, kw = jax.random.split(key)
        w = jax.random.normal(kw, (din, out_dim), jnp.float32) / jnp.sqrt(din)
        gamma = jnp.ones((out_dim,), jnp.float32)   # BatchNorm1d weight
        beta = jnp.zeros((out_dim,), jnp.float32)   # BatchNorm1d bias
        params.append((w, gamma, beta))
    return params


# --------------------------------- main ----------------------------------- #
if __name__ == "__main__":
    num_layers = 3
    num_nodes = 128
    inp_dim = 32
    out_dim = 128

    key = jax.random.PRNGKey(0)
    key, kx, ka = jax.random.split(key, 3)

    # node features g.x: [N, inp_dim]
    x = jax.random.normal(kx, (num_nodes, inp_dim), jnp.float32)

    # random dense adjacency with self-loops, row-normalized
    adj = (jax.random.uniform(ka, (num_nodes, num_nodes)) < 0.1).astype(jnp.float32)
    adj = jnp.maximum(adj, adj.T) + jnp.eye(num_nodes, dtype=jnp.float32)
    a_hat = adj / jnp.sum(adj, axis=1, keepdims=True)

    params = init_params(key, num_layers, inp_dim, out_dim)

    out = multilayer_message_passing_forward(a_hat, x, params, jk="last")
    out = jax.block_until_ready(out)
    assert out.shape == (num_nodes, out_dim)
    assert bool(jnp.all(jnp.isfinite(out)))
    print("KERNEL_OK")
</pallas_src>

<mosaic_0001>
module attributes {stable_mosaic.version = 11 : i64} {
  func.func @_fused_gnn_kernel(%arg0: memref<128x128xbf16, #tpu.memory_space<vmem>>, %arg1: memref<128x32xbf16, #tpu.memory_space<vmem>>, %arg2: memref<32x128xbf16, #tpu.memory_space<vmem>>, %arg3: memref<2x128x128xbf16, #tpu.memory_space<vmem>>, %arg4: memref<3x2x128xf32, #tpu.memory_space<vmem>>, %arg5: memref<128x128xf32, #tpu.memory_space<vmem>>) attributes {dimension_semantics = [], scalar_prefetch = 0 : i64, scratch_operands = 0 : i64, tpu.core_type = #tpu.core_type<tc>} {
    %c0 = arith.constant 0 : index
    %c0_0 = arith.constant 0 : index
    %0 = vector.load %arg0[%c0, %c0_0] : memref<128x128xbf16, #tpu.memory_space<vmem>>, vector<128x128xbf16>
    %c0_1 = arith.constant 0 : index
    %c0_2 = arith.constant 0 : index
    %1 = vector.load %arg1[%c0_1, %c0_2] : memref<128x32xbf16, #tpu.memory_space<vmem>>, vector<128x32xbf16>
    %c0_3 = arith.constant 0 : index
    %c0_4 = arith.constant 0 : index
    %2 = vector.load %arg2[%c0_3, %c0_4] : memref<32x128xbf16, #tpu.memory_space<vmem>>, vector<32x128xbf16>
    %cst = arith.constant dense<0.000000e+00> : vector<128x32xf32>
    %3 = tpu.matmul %0, %1, %cst {dimension_numbers = #tpu.dot_dimension_numbers<[1], [0], [0], [1], [0, 0, 1, 1], [], []>} : vector<128x128xbf16>, vector<128x32xbf16>, vector<128x32xf32> -> vector<128x32xf32>
    %4 = arith.truncf %3 : vector<128x32xf32> to vector<128x32xbf16>
    %cst_5 = arith.constant dense<0.000000e+00> : vector<128x128xf32>
    %5 = tpu.matmul %4, %2, %cst_5 {dimension_numbers = #tpu.dot_dimension_numbers<[1], [0], [0], [1], [0, 0, 1, 1], [], []>} : vector<128x32xbf16>, vector<32x128xbf16>, vector<128x128xf32> -> vector<128x128xf32>
    %c0_6 = arith.constant 0 : index
    %c0_7 = arith.constant 0 : index
    %c0_8 = arith.constant 0 : index
    %6 = vector.load %arg4[%c0_6, %c0_7, %c0_8] : memref<3x2x128xf32, #tpu.memory_space<vmem>>, vector<1x2x128xf32>
    %7 = vector.shape_cast %6 : vector<1x2x128xf32> to vector<2x128xf32>
    %8 = vector.extract_strided_slice %7 {offsets = [0, 0], sizes = [1, 128], strides = [1, 1]} : vector<2x128xf32> to vector<1x128xf32>
    %9 = vector.extract_strided_slice %7 {offsets = [1, 0], sizes = [1, 128], strides = [1, 1]} : vector<2x128xf32> to vector<1x128xf32>
    %cst_9 = arith.constant dense<0.000000e+00> : vector<128xf32>
    %10 = vector.multi_reduction <add>, %5, %cst_9 [0] : vector<128x128xf32> to vector<128xf32>
    %11 = vector.shape_cast %10 : vector<128xf32> to vector<1x128xf32>
    %cst_10 = arith.constant 1.280000e+02 : f32
    %12 = vector.broadcast %cst_10 : f32 to vector<1x128xf32>
    %13 = arith.divf %11, %12 : vector<1x128xf32>
    %14 = vector.broadcast %13 : vector<1x128xf32> to vector<128x128xf32>
    %15 = arith.subf %5, %14 : vector<128x128xf32>
    %16 = arith.mulf %15, %15 : vector<128x128xf32>
    %cst_11 = arith.constant dense<0.000000e+00> : vector<128xf32>
    %17 = vector.multi_reduction <add>, %16, %cst_11 [0] : vector<128x128xf32> to vector<128xf32>
    %18 = vector.shape_cast %17 : vector<128xf32> to vector<1x128xf32>
    %cst_12 = arith.constant 1.280000e+02 : f32
    %19 = vector.broadcast %cst_12 : f32 to vector<1x128xf32>
    %20 = arith.divf %18, %19 : vector<1x128xf32>
    %cst_13 = arith.constant 9.99999974E-6 : f32
    %21 = vector.broadcast %cst_13 : f32 to vector<1x128xf32>
    %22 = arith.addf %20, %21 : vector<1x128xf32>
    %23 = math.rsqrt %22 : vector<1x128xf32>
    %24 = arith.mulf %23, %8 : vector<1x128xf32>
    %25 = vector.broadcast %24 : vector<1x128xf32> to vector<128x128xf32>
    %26 = arith.mulf %15, %25 : vector<128x128xf32>
    %27 = vector.broadcast %9 : vector<1x128xf32> to vector<128x128xf32>
    %28 = arith.addf %26, %27 : vector<128x128xf32>
    %cst_14 = arith.constant 0.000000e+00 : f32
    %29 = vector.broadcast %cst_14 : f32 to vector<128x128xf32>
    %30 = arith.maximumf %28, %29 : vector<128x128xf32>
    %31 = arith.truncf %30 : vector<128x128xf32> to vector<128x128xbf16>
    %c0_15 = arith.constant 0 : index
    %c0_16 = arith.constant 0 : index
    %c0_17 = arith.constant 0 : index
    %32 = vector.load %arg3[%c0_15, %c0_16, %c0_17] : memref<2x128x128xbf16, #tpu.memory_space<vmem>>, vector<1x128x128xbf16>
    %33 = vector.shape_cast %32 : vector<1x128x128xbf16> to vector<128x128xbf16>
    %cst_18 = arith.constant dense<0.000000e+00> : vector<128x128xf32>
    %34 = tpu.matmul %0, %31, %cst_18 {dimension_numbers = #tpu.dot_dimension_numbers<[1], [0], [0], [1], [0, 0, 1, 1], [], []>} : vector<128x128xbf16>, vector<128x128xbf16>, vector<128x128xf32> -> vector<128x128xf32>
    %35 = arith.truncf %34 : vector<128x128xf32> to vector<128x128xbf16>
    %cst_19 = arith.constant dense<0.000000e+00> : vector<128x128xf32>
    %36 = tpu.matmul %35, %33, %cst_19 {dimension_numbers = #tpu.dot_dimension_numbers<[1], [0], [0], [1], [0, 0, 1, 1], [], []>} : vector<128x128xbf16>, vector<128x128xbf16>, vector<128x128xf32> -> vector<128x128xf32>
    %c1 = arith.constant 1 : index
    %c0_20 = arith.constant 0 : index
    %c0_21 = arith.constant 0 : index
    %37 = vector.load %arg4[%c1, %c0_20, %c0_21] : memref<3x2x128xf32, #tpu.memory_space<vmem>>, vector<1x2x128xf32>
    %38 = vector.shape_cast %37 : vector<1x2x128xf32> to vector<2x128xf32>
    %39 = vector.extract_strided_slice %38 {offsets = [0, 0], sizes = [1, 128], strides = [1, 1]} : vector<2x128xf32> to vector<1x128xf32>
    %40 = vector.extract_strided_slice %38 {offsets = [1, 0], sizes = [1, 128], strides = [1, 1]} : vector<2x128xf32> to vector<1x128xf32>
    %cst_22 = arith.constant dense<0.000000e+00> : vector<128xf32>
    %41 = vector.multi_reduction <add>, %36, %cst_22 [0] : vector<128x128xf32> to vector<128xf32>
    %42 = vector.shape_cast %41 : vector<128xf32> to vector<1x128xf32>
    %cst_23 = arith.constant 1.280000e+02 : f32
    %43 = vector.broadcast %cst_23 : f32 to vector<1x128xf32>
    %44 = arith.divf %42, %43 : vector<1x128xf32>
    %45 = vector.broadcast %44 : vector<1x128xf32> to vector<128x128xf32>
    %46 = arith.subf %36, %45 : vector<128x128xf32>
    %47 = arith.mulf %46, %46 : vector<128x128xf32>
    %cst_24 = arith.constant dense<0.000000e+00> : vector<128xf32>
    %48 = vector.multi_reduction <add>, %47, %cst_24 [0] : vector<128x128xf32> to vector<128xf32>
    %49 = vector.shape_cast %48 : vector<128xf32> to vector<1x128xf32>
    %cst_25 = arith.constant 1.280000e+02 : f32
    %50 = vector.broadcast %cst_25 : f32 to vector<1x128xf32>
    %51 = arith.divf %49, %50 : vector<1x128xf32>
    %cst_26 = arith.constant 9.99999974E-6 : f32
    %52 = vector.broadcast %cst_26 : f32 to vector<1x128xf32>
    %53 = arith.addf %51, %52 : vector<1x128xf32>
    %54 = math.rsqrt %53 : vector<1x128xf32>
    %55 = arith.mulf %54, %39 : vector<1x128xf32>
    %56 = vector.broadcast %55 : vector<1x128xf32> to vector<128x128xf32>
    %57 = arith.mulf %46, %56 : vector<128x128xf32>
    %58 = vector.broadcast %40 : vector<1x128xf32> to vector<128x128xf32>
    %59 = arith.addf %57, %58 : vector<128x128xf32>
    %cst_27 = arith.constant 0.000000e+00 : f32
    %60 = vector.broadcast %cst_27 : f32 to vector<128x128xf32>
    %61 = arith.maximumf %59, %60 : vector<128x128xf32>
    %62 = arith.truncf %61 : vector<128x128xf32> to vector<128x128xbf16>
    %c1_28 = arith.constant 1 : index
    %c0_29 = arith.constant 0 : index
    %c0_30 = arith.constant 0 : index
    %63 = vector.load %arg3[%c1_28, %c0_29, %c0_30] : memref<2x128x128xbf16, #tpu.memory_space<vmem>>, vector<1x128x128xbf16>
    %64 = vector.shape_cast %63 : vector<1x128x128xbf16> to vector<128x128xbf16>
    %cst_31 = arith.constant dense<0.000000e+00> : vector<128x128xf32>
    %65 = tpu.matmul %0, %62, %cst_31 {dimension_numbers = #tpu.dot_dimension_numbers<[1], [0], [0], [1], [0, 0, 1, 1], [], []>} : vector<128x128xbf16>, vector<128x128xbf16>, vector<128x128xf32> -> vector<128x128xf32>
    %66 = arith.truncf %65 : vector<128x128xf32> to vector<128x128xbf16>
    %cst_32 = arith.constant dense<0.000000e+00> : vector<128x128xf32>
    %67 = tpu.matmul %66, %64, %cst_32 {dimension_numbers = #tpu.dot_dimension_numbers<[1], [0], [0], [1], [0, 0, 1, 1], [], []>} : vector<128x128xbf16>, vector<128x128xbf16>, vector<128x128xf32> -> vector<128x128xf32>
    %c2 = arith.constant 2 : index
    %c0_33 = arith.constant 0 : index
    %c0_34 = arith.constant 0 : index
    %68 = vector.load %arg4[%c2, %c0_33, %c0_34] : memref<3x2x128xf32, #tpu.memory_space<vmem>>, vector<1x2x128xf32>
    %69 = vector.shape_cast %68 : vector<1x2x128xf32> to vector<2x128xf32>
    %70 = vector.extract_strided_slice %69 {offsets = [0, 0], sizes = [1, 128], strides = [1, 1]} : vector<2x128xf32> to vector<1x128xf32>
    %71 = vector.extract_strided_slice %69 {offsets = [1, 0], sizes = [1, 128], strides = [1, 1]} : vector<2x128xf32> to vector<1x128xf32>
    %cst_35 = arith.constant dense<0.000000e+00> : vector<128xf32>
    %72 = vector.multi_reduction <add>, %67, %cst_35 [0] : vector<128x128xf32> to vector<128xf32>
    %73 = vector.shape_cast %72 : vector<128xf32> to vector<1x128xf32>
    %cst_36 = arith.constant 1.280000e+02 : f32
    %74 = vector.broadcast %cst_36 : f32 to vector<1x128xf32>
    %75 = arith.divf %73, %74 : vector<1x128xf32>
    %76 = vector.broadcast %75 : vector<1x128xf32> to vector<128x128xf32>
    %77 = arith.subf %67, %76 : vector<128x128xf32>
    %78 = arith.mulf %77, %77 : vector<128x128xf32>
    %cst_37 = arith.constant dense<0.000000e+00> : vector<128xf32>
    %79 = vector.multi_reduction <add>, %78, %cst_37 [0] : vector<128x128xf32> to vector<128xf32>
    %80 = vector.shape_cast %79 : vector<128xf32> to vector<1x128xf32>
    %cst_38 = arith.constant 1.280000e+02 : f32
    %81 = vector.broadcast %cst_38 : f32 to vector<1x128xf32>
    %82 = arith.divf %80, %81 : vector<1x128xf32>
    %cst_39 = arith.constant 9.99999974E-6 : f32
    %83 = vector.broadcast %cst_39 : f32 to vector<1x128xf32>
    %84 = arith.addf %82, %83 : vector<1x128xf32>
    %85 = math.rsqrt %84 : vector<1x128xf32>
    %86 = arith.mulf %85, %70 : vector<1x128xf32>
    %87 = vector.broadcast %86 : vector<1x128xf32> to vector<128x128xf32>
    %88 = arith.mulf %77, %87 : vector<128x128xf32>
    %89 = vector.broadcast %71 : vector<1x128xf32> to vector<128x128xf32>
    %90 = arith.addf %88, %89 : vector<128x128xf32>
    %c0_40 = arith.constant 0 : index
    %c0_41 = arith.constant 0 : index
    %91 = vector.load %arg5[%c0_40, %c0_41] : memref<128x128xf32, #tpu.memory_space<vmem>>, vector<128x128xf32>
    tpu.vector_store %arg5[%c0_40, %c0_41], %90 {strides = array<i32>} : memref<128x128xf32, #tpu.memory_space<vmem>>, vector<128x128xf32>,
    return
  }
}

</mosaic_0001>

<llo_original>
// kernel: tpu_custom_call.1
$region0: #{tpu_custom_call.1}
  #allocation0 [shape = 'u32[]', space=smem, size = 0x4, offset = 0x4, fixed_abs, tag = 'smem constant byte address 0x4 - core index']
  #allocation1 [shape = 'u32[144,128]{1,0:T(1,128)}', space=vmem, size = 0x12000, scoped, tag = 'internal scratch']
  %s0 = inlined_call_operand.vmem [shape: bf16[128,128], index: 0, kind: input, shape index: {}]
  %s1 = inlined_call_operand.vmem [shape: bf16[128,32], index: 1, kind: input, shape index: {}]
  %s2 = inlined_call_operand.vmem [shape: bf16[32,128], index: 2, kind: input, shape index: {}]
  %s3 = inlined_call_operand.hbm [shape: bf16[2,128,128], index: 3, kind: input, shape index: {}]
  %s4 = inlined_call_operand.vmem [shape: f32[3,2,128], index: 4, kind: input, shape index: {}]
  %s5 = inlined_call_operand.hbm [shape: f32[128,128], index: 5, kind: output, shape index: {}]
  %s6 = sld [smem:[#allocation0]]
  $region34: #{tpu_custom_call.1} parent=0
    _
  %s8 = ssub.s32 1, %s6
  %s9 = scalar_select 0, %s8, %s6
  $region1: #{tpu_custom_call.1} parent=0
    #allocation2 [shape = 'u8[65536]{0}', space=vmem, size = 0x10000, scoped, tag = 'input window, operand 3, single buffered']
    #allocation3 [shape = 's32[1]{0}', space=sflag, size = 0x4, scoped, tag = 'scoped memory for tpu_custom_call.1']
    #allocation4 [shape = 's32[1]{0}', space=sflag, size = 0x4, scoped, tag = 'scoped memory for tpu_custom_call.1']
    #allocation5 [shape = 'u8[65536]{0}', space=vmem, size = 0x10000, scoped, tag = 'output window, operand 0, single buffered']
    %10 = vsyncpa [#allocation3], 0
    %11 = vsyncpa [#allocation4], 0
    // Predicated region
    $region2: #{tpu_custom_call.1} parent=1 // pred_check
      _
    $region3: #{tpu_custom_call.1} parent=1 // pred_check_branch
      %13 = sbr.rel (0) target = $region5
    $region4: #{tpu_custom_call.1} parent=1 // pred_region
      _
    $region5: #{tpu_custom_call.1} parent=1 // pred_fallthru
      _
    // Predicated region
    $region6: #{tpu_custom_call.1} parent=1 // pred_check
      _
    $region7: #{tpu_custom_call.1} parent=1 // pred_check_branch
      %15 = sbr.rel (0) target = $region9
    $region8: #{tpu_custom_call.1} parent=1 // pred_region
      _
    $region9: #{tpu_custom_call.1} parent=1 // pred_fallthru
      _
    // Predicated region
    $region10: #{tpu_custom_call.1} parent=1 // pred_check
      _
    $region11: #{tpu_custom_call.1} parent=1 // pred_check_branch
      %17 = sbr.rel (0) target = $region13
    $region12: #{tpu_custom_call.1} parent=1 // pred_region
      _
    $region13: #{tpu_custom_call.1} parent=1 // pred_fallthru
      _
    // Predicated region
    $region14: #{tpu_custom_call.1} parent=1 // pred_check
      _
    $region15: #{tpu_custom_call.1} parent=1 // pred_check_branch
      %19 = sbr.rel (0) target = $region17
    $region16: #{tpu_custom_call.1} parent=1 // pred_region
      %s21 = ssub.s32 2048, 2048
      %22 = vsyncadd [#allocation3], %s21
      %s23 = sshll.u32 [#allocation2], 4
      %s24 = int_to_ptr.vmem [resolvable:$true] %s23
      %29 = dma.hbm_to_vmem [thread:$0]  %s3, 2048, %s24, [#allocation3], 64, 64, 4
    $region17: #{tpu_custom_call.1} parent=1 // pred_fallthru
      _
    // Predicated region
    $region18: #{tpu_custom_call.1} parent=1 // pred_check
      _
    $region19: #{tpu_custom_call.1} parent=1 // pred_check_branch
      %31 = sbr.rel (0) target = $region21
    $region20: #{tpu_custom_call.1} parent=1 // pred_region
      _
    $region21: #{tpu_custom_call.1} parent=1 // pred_fallthru
      _
    // Predicated region
    $region22: #{tpu_custom_call.1} parent=1 // pred_check
      _
    $region23: #{tpu_custom_call.1} parent=1 // pred_check_branch
      %33 = sbr.rel (0) target = $region25
    $region24: #{tpu_custom_call.1} parent=1 // pred_region
      %34 = dma.done [#allocation3], 2048
    $region25: #{tpu_custom_call.1} parent=1 // pred_fallthru
      _
    %v36 = vld [vmem:[%s0] sm:$0xf]
    %v37 = vld [vmem:[%s0 + $0x4] sm:$0xf]
    %v38 = vld [vmem:[%s0 + $0x8] sm:$0xf]
    %v39 = vld [vmem:[%s0 + $0xc] sm:$0xf]
    %v40 = vld [vmem:[%s0 + $0x10] sm:$0xf]
    %v41 = vld [vmem:[%s0 + $0x14] sm:$0xf]
    %v42 = vld [vmem:[%s0 + $0x18] sm:$0xf]
    %v43 = vld [vmem:[%s0 + $0x1c] sm:$0xf]
    %v44 = vld [vmem:[%s0 + $0x20] sm:$0xf]
    %v45 = vld [vmem:[%s0 + $0x24] sm:$0xf]
    %v46 = vld [vmem:[%s0 + $0x28] sm:$0xf]
    %v47 = vld [vmem:[%s0 + $0x2c] sm:$0xf]
    %v48 = vld [vmem:[%s0 + $0x30] sm:$0xf]
    %v49 = vld [vmem:[%s0 + $0x34] sm:$0xf]
    %v50 = vld [vmem:[%s0 + $0x38] sm:$0xf]
    %v51 = vld [vmem:[%s0 + $0x3c] sm:$0xf]
    %v52 = vld [vmem:[%s1] sm:$0xf]
    %v53 = vld [vmem:[%s1 + $0x4] sm:$0xf]
    %v54 = vld [vmem:[%s1 + $0x8] sm:$0xf]
    %v55 = vld [vmem:[%s1 + $0xc] sm:$0xf]
    %v56 = vld [vmem:[%s1 + $0x10] sm:$0xf]
    %v57 = vld [vmem:[%s1 + $0x14] sm:$0xf]
    %v58 = vld [vmem:[%s1 + $0x18] sm:$0xf]
    %v59 = vld [vmem:[%s1 + $0x1c] sm:$0xf]
    %v60 = vld [vmem:[%s1 + $0x20] sm:$0xf]
    %v61 = vld [vmem:[%s1 + $0x24] sm:$0xf]
    %v62 = vld [vmem:[%s1 + $0x28] sm:$0xf]
    %v63 = vld [vmem:[%s1 + $0x2c] sm:$0xf]
    %v64 = vld [vmem:[%s1 + $0x30] sm:$0xf]
    %v65 = vld [vmem:[%s1 + $0x34] sm:$0xf]
    %v66 = vld [vmem:[%s1 + $0x38] sm:$0xf]
    %v67 = vld [vmem:[%s1 + $0x3c] sm:$0xf]
    %v68 = vld [vmem:[%s2] sm:$0xf]
    %v69 = vld [vmem:[%s2 + $0x4] sm:$0xf]
    %v70 = vld [vmem:[%s2 + $0x8] sm:$0xf]
    %v71 = vld [vmem:[%s2 + $0xc] sm:$0xf]
    %v88 = vunpack.c.l.b16 %v36
    %v89 = vunpack.c.l.b16 %v37
    %v90 = vunpack.c.l.b16 %v38
    %v91 = vunpack.c.l.b16 %v39
    %v92 = vunpack.c.l.b16 %v40
    %v93 = vunpack.c.l.b16 %v41
    %v94 = vunpack.c.l.b16 %v42
    %v95 = vunpack.c.l.b16 %v43
    %v96 = vunpack.c.l.b16 %v44
    %v97 = vunpack.c.l.b16 %v45
    %v98 = vunpack.c.l.b16 %v46
    %v99 = vunpack.c.l.b16 %v47
    %v100 = vunpack.c.l.b16 %v48
    %v101 = vunpack.c.l.b16 %v49
    %v102 = vunpack.c.l.b16 %v50
    %v103 = vunpack.c.l.b16 %v51
    %v104 = vpack.c.b16 %v89, %v88
    %v105 = vpack.c.b16 %v91, %v90
    %v106 = vpack.c.b16 %v93, %v92
    %v107 = vpack.c.b16 %v95, %v94
    %v108 = vpack.c.b16 %v97, %v96
    %v109 = vpack.c.b16 %v99, %v98
    %v110 = vpack.c.b16 %v101, %v100
    %v111 = vpack.c.b16 %v103, %v102
    %v136 = vunpack.c.l.b16 %v52
    %v137 = vunpack.c.l.b16 %v53
    %v138 = vunpack.c.l.b16 %v54
    %v139 = vunpack.c.l.b16 %v55
    %v140 = vunpack.c.l.b16 %v56
    %v141 = vunpack.c.l.b16 %v57
    %v142 = vunpack.c.l.b16 %v58
    %v143 = vunpack.c.l.b16 %v59
    %v144 = vunpack.c.l.b16 %v60
    %v145 = vunpack.c.l.b16 %v61
    %v146 = vunpack.c.l.b16 %v62
    %v147 = vunpack.c.l.b16 %v63
    %v148 = vunpack.c.l.b16 %v64
    %v149 = vunpack.c.l.b16 %v65
    %v150 = vunpack.c.l.b16 %v66
    %v151 = vunpack.c.l.b16 %v67
    %v152 = vpack.c.b16 %v137, %v136
    %v153 = vpack.c.b16 %v139, %v138
    %v154 = vpack.c.b16 %v141, %v140
    %v155 = vpack.c.b16 %v143, %v142
    %v156 = vpack.c.b16 %v145, %v144
    %v157 = vpack.c.b16 %v147, %v146
    %v158 = vpack.c.b16 %v149, %v148
    %v159 = vpack.c.b16 %v151, %v150
    %168 = vmatprep.subr.bf16.mxu0 0
    %169 = vmatpush1.bf16.msra.mxu0 %v152
    %170 = vmatprep.subr.bf16.mxu0 0
    %171 = vmatpush1.bf16.msra.mxu0 %v153
    %172 = vmatprep.subr.bf16.mxu0 0
    %173 = vmatpush1.bf16.msra.mxu0 %v154
    %174 = vmatprep.subr.bf16.mxu0 0
    %175 = vmatpush1.bf16.msra.mxu0 %v155
    %176 = vmatprep.subr.bf16.mxu0 0
    %177 = vmatpush1.bf16.msra.mxu0 %v156
    %178 = vmatprep.subr.bf16.mxu0 0
    %179 = vmatpush1.bf16.msra.mxu0 %v157
    %180 = vmatprep.subr.bf16.mxu0 0
    %181 = vmatpush1.bf16.msra.mxu0 %v158
    %182 = vmatprep.subr.bf16.mxu0 0
    %183 = vmatpush1.bf16.msra.mxu0 %v159
    %184 = vmatprep.subr.bf16.mxu0 0
    %185 = vmatpush1.bf16.msra.mxu0 0
    %186 = vmatprep.subr.bf16.mxu0 0
    %187 = vmatpush1.bf16.msra.mxu0 0
    %188 = vmatprep.subr.bf16.mxu0 0
    %189 = vmatpush1.bf16.msra.mxu0 0
    %190 = vmatprep.subr.bf16.mxu0 0
    %191 = vmatpush1.bf16.msra.mxu0 0
    %192 = vmatprep.subr.bf16.mxu0 0
    %193 = vmatpush1.bf16.msra.mxu0 0
    %194 = vmatprep.subr.bf16.mxu0 0
    %195 = vmatpush1.bf16.msra.mxu0 0
    %196 = vmatprep.subr.bf16.mxu0 0
    %197 = vmatpush1.bf16.msra.mxu0 0
    %198 = vmatprep.subr.bf16.mxu0 0
    %199 = vmatpush1.bf16.msra.mxu0 0
    %200 = vmatprep.mubr.bf16.mxu0 0
    %201 = vmatmul.mubr.bf16.gmra.mrb[0].mxu0 %v104
    %v202 = vpop.f32.mrb[0].mxu0
    %v203 = vadd.f32 0.0, %v202
    %v204 = vpop.f32.mrb[0].mxu0
    %v205 = vpop.f32.mrb[0].mxu0
    %v206 = vadd.f32 0.0, %v205
    %v207 = vpop.f32.mrb[0].mxu0
    %208 = vmatprep.mubr.bf16.mxu0 0
    %209 = vmatmul.mubr.bf16.gmra.mrb[0].mxu0 %v105
    %v210 = vpop.f32.mrb[0].mxu0
    %v211 = vadd.f32 0.0, %v210
    %v212 = vpop.f32.mrb[0].mxu0
    %v213 = vpop.f32.mrb[0].mxu0
    %v214 = vadd.f32 0.0, %v213
    %v215 = vpop.f32.mrb[0].mxu0
    %216 = vmatprep.mubr.bf16.mxu0 0
    %217 = vmatmul.mubr.bf16.gmra.mrb[0].mxu0 %v106
    %v218 = vpop.f32.mrb[0].mxu0
    %v219 = vadd.f32 0.0, %v218
    %v220 = vpop.f32.mrb[0].mxu0
    %v221 = vpop.f32.mrb[0].mxu0
    %v222 = vadd.f32 0.0, %v221
    %v223 = vpop.f32.mrb[0].mxu0
    %224 = vmatprep.mubr.bf16.mxu0 0
    %225 = vmatmul.mubr.bf16.gmra.mrb[0].mxu0 %v107
    %v226 = vpop.f32.mrb[0].mxu0
    %v227 = vadd.f32 0.0, %v226
    %v228 = vpop.f32.mrb[0].mxu0
    %v229 = vpop.f32.mrb[0].mxu0
    %v230 = vadd.f32 0.0, %v229
    %v231 = vpop.f32.mrb[0].mxu0
    %232 = vmatprep.mubr.bf16.mxu0 0
    %233 = vmatmul.mubr.bf16.gmra.mrb[0].mxu0 %v108
    %v234 = vpop.f32.mrb[0].mxu0
    %v235 = vadd.f32 0.0, %v234
    %v236 = vpop.f32.mrb[0].mxu0
    %v237 = vpop.f32.mrb[0].mxu0
    %v238 = vadd.f32 0.0, %v237
    %v239 = vpop.f32.mrb[0].mxu0
    %240 = vmatprep.mubr.bf16.mxu0 0
    %241 = vmatmul.mubr.bf16.gmra.mrb[0].mxu0 %v109
    %v242 = vpop.f32.mrb[0].mxu0
    %v243 = vadd.f32 0.0, %v242
    %v244 = vpop.f32.mrb[0].mxu0
    %v245 = vpop.f32.mrb[0].mxu0
    %v246 = vadd.f32 0.0, %v245
    %v247 = vpop.f32.mrb[0].mxu0
    %248 = vmatprep.mubr.bf16.mxu0 0
    %249 = vmatmul.mubr.bf16.gmra.mrb[0].mxu0 %v110
    %v250 = vpop.f32.mrb[0].mxu0
    %v251 = vadd.f32 0.0, %v250
    %v252 = vpop.f32.mrb[0].mxu0
    %v253 = vpop.f32.mrb[0].mxu0
    %v254 = vadd.f32 0.0, %v253
    %v255 = vpop.f32.mrb[0].mxu0
    %256 = vmatprep.mubr.bf16.mxu0 0
    %257 = vmatmul.mubr.bf16.gmra.mrb[0].mxu0 %v111
    %v258 = vpop.f32.mrb[0].mxu0
    %v259 = vadd.f32 0.0, %v258
    %v260 = vpop.f32.mrb[0].mxu0
    %v261 = vpop.f32.mrb[0].mxu0
    %v262 = vadd.f32 0.0, %v261
    %v263 = vpop.f32.mrb[0].mxu0
    %264 = vdwg.mxu0
    %v265 = vpack.c.bf16 %v206, %v203
    %v266 = vpack.c.bf16 %v214, %v211
    %v267 = vpack.c.bf16 %v222, %v219
    %v268 = vpack.c.bf16 %v230, %v227
    %v269 = vpack.c.bf16 %v238, %v235
    %v270 = vpack.c.bf16 %v246, %v243
    %v271 = vpack.c.bf16 %v254, %v251
    %v272 = vpack.c.bf16 %v262, %v259
    %v277 = vunpack.c.l.b16 %v68
    %v278 = vunpack.c.l.b16 %v69
    %v279 = vunpack.c.l.b16 %v70
    %v280 = vunpack.c.l.b16 %v71
    %v281 = vpack.c.b16 %v278, %v277
    %v282 = vpack.c.b16 %v280, %v279
    %vm285 = vcmask 261120
    %v287 = vsel %vm285, %v265, 0
    %v290 = vsel %vm285, %v266, 0
    %v293 = vsel %vm285, %v267, 0
    %v296 = vsel %vm285, %v268, 0
    %v299 = vsel %vm285, %v269, 0
    %v302 = vsel %vm285, %v270, 0
    %v305 = vsel %vm285, %v271, 0
    %v308 = vsel %vm285, %v272, 0
    %310 = vmatprep.subr.bf16.mxu0 0
    %311 = vmatpush1.bf16.msra.mxu0 %v281
    %312 = vmatprep.subr.bf16.mxu0 0
    %313 = vmatpush1.bf16.msra.mxu0 %v282
    %314 = vmatprep.subr.bf16.mxu0 0
    %315 = vmatpush1.bf16.msra.mxu0 0
    %316 = vmatprep.subr.bf16.mxu0 0
    %317 = vmatpush1.bf16.msra.mxu0 0
    %318 = vmatprep.subr.bf16.mxu0 0
    %319 = vmatpush1.bf16.msra.mxu0 0
    %320 = vmatprep.subr.bf16.mxu0 0
    %321 = vmatpush1.bf16.msra.mxu0 0
    %322 = vmatprep.subr.bf16.mxu0 0
    %323 = vmatpush1.bf16.msra.mxu0 0
    %324 = vmatprep.subr.bf16.mxu0 0
    %325 = vmatpush1.bf16.msra.mxu0 0
    %326 = vmatprep.subr.bf16.mxu0 0
    %327 = vmatpush1.bf16.msra.mxu0 0
    %328 = vmatprep.subr.bf16.mxu0 0
    %329 = vmatpush1.bf16.msra.mxu0 0
    %330 = vmatprep.subr.bf16.mxu0 0
    %331 = vmatpush1.bf16.msra.mxu0 0
    %332 = vmatprep.subr.bf16.mxu0 0
    %333 = vmatpush1.bf16.msra.mxu0 0
    %334 = vmatprep.subr.bf16.mxu0 0
    %335 = vmatpush1.bf16.msra.mxu0 0
    %336 = vmatprep.subr.bf16.mxu0 0
    %337 = vmatpush1.bf16.msra.mxu0 0
    %338 = vmatprep.subr.bf16.mxu0 0
    %339 = vmatpush1.bf16.msra.mxu0 0
    %340 = vmatprep.subr.bf16.mxu0 0
    %341 = vmatpush1.bf16.msra.mxu0 0
    %342 = vmatprep.mubr.bf16.mxu0 0
    %343 = vmatmul.mubr.bf16.gmra.mrb[0].mxu0 %v287
    %v344 = vpop.f32.mrb[0].mxu0
    %v345 = vadd.f32 0.0, %v344
    %v346 = vpop.f32.mrb[0].mxu0
    %v347 = vpop.f32.mrb[0].mxu0
    %v348 = vadd.f32 0.0, %v347
    %v349 = vpop.f32.mrb[0].mxu0
    %350 = vmatprep.mubr.bf16.mxu0 0
    %351 = vmatmul.mubr.bf16.gmra.mrb[0].mxu0 %v290
    %v352 = vpop.f32.mrb[0].mxu0
    %v353 = vadd.f32 0.0, %v352
    %v354 = vpop.f32.mrb[0].mxu0
    %v355 = vpop.f32.mrb[0].mxu0
    %v356 = vadd.f32 0.0, %v355
    %v357 = vpop.f32.mrb[0].mxu0
    %358 = vmatprep.mubr.bf16.mxu0 0
    %359 = vmatmul.mubr.bf16.gmra.mrb[0].mxu0 %v293
    %v360 = vpop.f32.mrb[0].mxu0
    %v361 = vadd.f32 0.0, %v360
    %v362 = vpop.f32.mrb[0].mxu0
    %v363 = vpop.f32.mrb[0].mxu0
    %v364 = vadd.f32 0.0, %v363
    %v365 = vpop.f32.mrb[0].mxu0
    %366 = vmatprep.mubr.bf16.mxu0 0
    %367 = vmatmul.mubr.bf16.gmra.mrb[0].mxu0 %v296
    %v368 = vpop.f32.mrb[0].mxu0
    %v369 = vadd.f32 0.0, %v368
    %v370 = vpop.f32.mrb[0].mxu0
    %v371 = vpop.f32.mrb[0].mxu0
    %v372 = vadd.f32 0.0, %v371
    %v373 = vpop.f32.mrb[0].mxu0
    %374 = vmatprep.mubr.bf16.mxu0 0
    %375 = vmatmul.mubr.bf16.gmra.mrb[0].mxu0 %v299
    %v376 = vpop.f32.mrb[0].mxu0
    %v377 = vadd.f32 0.0, %v376
    %v378 = vpop.f32.mrb[0].mxu0
    %v379 = vpop.f32.mrb[0].mxu0
    %v380 = vadd.f32 0.0, %v379
    %v381 = vpop.f32.mrb[0].mxu0
    %382 = vmatprep.mubr.bf16.mxu0 0
    %383 = vmatmul.mubr.bf16.gmra.mrb[0].mxu0 %v302
    %v384 = vpop.f32.mrb[0].mxu0
    %v385 = vadd.f32 0.0, %v384
    %v386 = vpop.f32.mrb[0].mxu0
    %v387 = vpop.f32.mrb[0].mxu0
    %v388 = vadd.f32 0.0, %v387
    %v389 = vpop.f32.mrb[0].mxu0
    %390 = vmatprep.mubr.bf16.mxu0 0
    %391 = vmatmul.mubr.bf16.gmra.mrb[0].mxu0 %v305
    %v392 = vpop.f32.mrb[0].mxu0
    %v393 = vadd.f32 0.0, %v392
    %v394 = vpop.f32.mrb[0].mxu0
    %v395 = vpop.f32.mrb[0].mxu0
    %v396 = vadd.f32 0.0, %v395
    %v397 = vpop.f32.mrb[0].mxu0
    %398 = vmatprep.mubr.bf16.mxu0 0
    %399 = vmatmul.mubr.bf16.gmra.mrb[0].mxu0 %v308
    %v400 = vpop.f32.mrb[0].mxu0
    %v401 = vadd.f32 0.0, %v400
    %v402 = vpop.f32.mrb[0].mxu0
    %v403 = vpop.f32.mrb[0].mxu0
    %v404 = vadd.f32 0.0, %v403
    %v405 = vpop.f32.mrb[0].mxu0
    %406 = vdwg.mxu0
    %v407 = vld [vmem:[%s4] sm:$0x3]
    %v408 = vadd.f32 %v345, %v348
    %v409 = vadd.f32 %v408, %v353
    %v410 = vadd.f32 %v409, %v356
    %v411 = vadd.f32 %v410, %v361
    %v412 = vadd.f32 %v411, %v364
    %v413 = vadd.f32 %v412, %v369
    %v414 = vadd.f32 %v413, %v372
    %v415 = vadd.f32 %v414, %v377
    %v416 = vadd.f32 %v415, %v380
    %v417 = vadd.f32 %v416, %v385
    %v418 = vadd.f32 %v417, %v388
    %v419 = vadd.f32 %v418, %v393
    %v420 = vadd.f32 %v419, %v396
    %v421 = vadd.f32 %v420, %v401
    %v422 = vadd.f32 %v421, %v404
    %v423 = vrot.slane %v422, 4
    %v424 = vadd.f32 %v422, %v423
    %v425 = vrot.slane %v424, 2
    %v426 = vadd.f32 %v424, %v425
    %v427 = vrot.slane %v426, 1
    %v428 = vadd.f32 %v426, %v427
    %v429 = vrcp.pop 128.0
    %v430 = vmul.f32 %v428, %v429
    %v431 = vsub.f32 %v345, %v430
    %v432 = vsub.f32 %v348, %v430
    %v433 = vsub.f32 %v353, %v430
    %v434 = vsub.f32 %v356, %v430
    %v435 = vsub.f32 %v361, %v430
    %v436 = vsub.f32 %v364, %v430
    %v437 = vsub.f32 %v369, %v430
    %v438 = vsub.f32 %v372, %v430
    %v439 = vsub.f32 %v377, %v430
    %v440 = vsub.f32 %v380, %v430
    %v441 = vsub.f32 %v385, %v430
    %v442 = vsub.f32 %v388, %v430
    %v443 = vsub.f32 %v393, %v430
    %v444 = vsub.f32 %v396, %v430
    %v445 = vsub.f32 %v401, %v430
    %v446 = vsub.f32 %v404, %v430
    %v447 = vmul.f32 %v431, %v431
    %v448 = vmul.f32 %v432, %v432
    %v449 = vmul.f32 %v433, %v433
    %v450 = vmul.f32 %v434, %v434
    %v451 = vmul.f32 %v435, %v435
    %v452 = vmul.f32 %v436, %v436
    %v453 = vmul.f32 %v437, %v437
    %v454 = vmul.f32 %v438, %v438
    %v455 = vmul.f32 %v439, %v439
    %v456 = vmul.f32 %v440, %v440
    %v457 = vmul.f32 %v441, %v441
    %v458 = vmul.f32 %v442, %v442
    %v459 = vmul.f32 %v443, %v443
    %v460 = vmul.f32 %v444, %v444
    %v461 = vmul.f32 %v445, %v445
    %v462 = vmul.f32 %v446, %v446
    %v463 = vadd.f32 %v447, %v448
    %v464 = vadd.f32 %v463, %v449
    %v465 = vadd.f32 %v464, %v450
    %v466 = vadd.f32 %v465, %v451
    %v467 = vadd.f32 %v466, %v452
    %v468 = vadd.f32 %v467, %v453
    %v469 = vadd.f32 %v468, %v454
    %v470 = vadd.f32 %v469, %v455
    %v471 = vadd.f32 %v470, %v456
    %v472 = vadd.f32 %v471, %v457
    %v473 = vadd.f32 %v472, %v458
    %v474 = vadd.f32 %v473, %v459
    %v475 = vadd.f32 %v474, %v460
    %v476 = vadd.f32 %v475, %v461
    %v477 = vadd.f32 %v476, %v462
    %v478 = vrot.slane %v477, 4
    %v479 = vadd.f32 %v477, %v478
    %v480 = vrot.slane %v479, 2
    %v481 = vadd.f32 %v479, %v480
    %v482 = vrot.slane %v481, 1
    %v483 = vadd.f32 %v481, %v482
    %v484 = vmul.f32 %v483, %v429
    %v485 = vadd.f32 %v484, 1e-05
    %v486 = vrsqrt.pop %v485
    %v487 = vmul.f32 %v486, %v407
    %v488 = vlaneseq
    %v489 = vshrl.u32 %v488, 7
    %v490 = vsub.s32 0, %v489
    %v491 = vrot.slane %v487, %v490
    %v492 = vmul.f32 %v431, %v491
    %v493 = vmul.f32 %v432, %v491
    %v494 = vmul.f32 %v433, %v491
    %v495 = vmul.f32 %v434, %v491
    %v496 = vmul.f32 %v435, %v491
    %v497 = vmul.f32 %v436, %v491
    %v498 = vmul.f32 %v437, %v491
    %v499 = vmul.f32 %v438, %v491
    %v500 = vmul.f32 %v439, %v491
    %v501 = vmul.f32 %v440, %v491
    %v502 = vmul.f32 %v441, %v491
    %v503 = vmul.f32 %v442, %v491
    %v504 = vmul.f32 %v443, %v491
    %v505 = vmul.f32 %v444, %v491
    %v506 = vmul.f32 %v445, %v491
    %v507 = vmul.f32 %v446, %v491
    %v508 = vlaneseq
    %v509 = vshrl.u32 %v508, 7
    %v510 = vsub.s32 1, %v509
    %v511 = vrot.slane %v407, %v510
    %v512 = vadd.f32 %v492, %v511
    %v513 = vadd.f32 %v493, %v511
    %v514 = vadd.f32 %v494, %v511
    %v515 = vadd.f32 %v495, %v511
    %v516 = vadd.f32 %v496, %v511
    %v517 = vadd.f32 %v497, %v511
    %v518 = vadd.f32 %v498, %v511
    %v519 = vadd.f32 %v499, %v511
    %v520 = vadd.f32 %v500, %v511
    %v521 = vadd.f32 %v501, %v511
    %v522 = vadd.f32 %v502, %v511
    %v523 = vadd.f32 %v503, %v511
    %v524 = vadd.f32 %v504, %v511
    %v525 = vadd.f32 %v505, %v511
    %v526 = vadd.f32 %v506, %v511
    %v527 = vadd.f32 %v507, %v511
    %v528 = vmax.f32 %v512, 0.0
    %v529 = vmax.f32 %v513, 0.0
    %v530 = vmax.f32 %v514, 0.0
    %v531 = vmax.f32 %v515, 0.0
    %v532 = vmax.f32 %v516, 0.0
    %v533 = vmax.f32 %v517, 0.0
    %v534 = vmax.f32 %v518, 0.0
    %v535 = vmax.f32 %v519, 0.0
    %v536 = vmax.f32 %v520, 0.0
    %v537 = vmax.f32 %v521, 0.0
    %v538 = vmax.f32 %v522, 0.0
    %v539 = vmax.f32 %v523, 0.0
    %v540 = vmax.f32 %v524, 0.0
    %v541 = vmax.f32 %v525, 0.0
    %v542 = vmax.f32 %v526, 0.0
    %v543 = vmax.f32 %v527, 0.0
    %v544 = vpack.c.bf16 %v529, %v528
    %v545 = vpack.c.bf16 %v531, %v530
    %v546 = vpack.c.bf16 %v533, %v532
    %v547 = vpack.c.bf16 %v535, %v534
    %v548 = vpack.c.bf16 %v537, %v536
    %v549 = vpack.c.bf16 %v539, %v538
    %v550 = vpack.c.bf16 %v541, %v540
    %v551 = vpack.c.bf16 %v543, %v542
    %v552 = vld [vmem:[#allocation2] sm:$0xf]
    %v553 = vld [vmem:[#allocation2 + $0x4] sm:$0xf]
    %v554 = vld [vmem:[#allocation2 + $0x8] sm:$0xf]
    %v555 = vld [vmem:[#allocation2 + $0xc] sm:$0xf]
    %v556 = vld [vmem:[#allocation2 + $0x10] sm:$0xf]
    %v557 = vld [vmem:[#allocation2 + $0x14] sm:$0xf]
    %v558 = vld [vmem:[#allocation2 + $0x18] sm:$0xf]
    %v559 = vld [vmem:[#allocation2 + $0x1c] sm:$0xf]
    %v560 = vld [vmem:[#allocation2 + $0x20] sm:$0xf]
    %v561 = vld [vmem:[#allocation2 + $0x24] sm:$0xf]
    %v562 = vld [vmem:[#allocation2 + $0x28] sm:$0xf]
    %v563 = vld [vmem:[#allocation2 + $0x2c] sm:$0xf]
    %v564 = vld [vmem:[#allocation2 + $0x30] sm:$0xf]
    %v565 = vld [vmem:[#allocation2 + $0x34] sm:$0xf]
    %v566 = vld [vmem:[#allocation2 + $0x38] sm:$0xf]
    %v567 = vld [vmem:[#allocation2 + $0x3c] sm:$0xf]
    %568 = vmatprep.subr.bf16.mxu0 0
    %569 = vmatpush1.bf16.msra.mxu0 %v544
    %570 = vmatprep.subr.bf16.mxu0 0
    %571 = vmatpush1.bf16.msra.mxu0 %v545
    %572 = vmatprep.subr.bf16.mxu0 0
    %573 = vmatpush1.bf16.msra.mxu0 %v546
    %574 = vmatprep.subr.bf16.mxu0 0
    %575 = vmatpush1.bf16.msra.mxu0 %v547
    %576 = vmatprep.subr.bf16.mxu0 0
    %577 = vmatpush1.bf16.msra.mxu0 %v548
    %578 = vmatprep.subr.bf16.mxu0 0
    %579 = vmatpush1.bf16.msra.mxu0 %v549
    %580 = vmatprep.subr.bf16.mxu0 0
    %581 = vmatpush1.bf16.msra.mxu0 %v550
    %582 = vmatprep.subr.bf16.mxu0 0
    %583 = vmatpush1.bf16.msra.mxu0 %v551
    %584 = vmatprep.subr.bf16.mxu0 0
    %585 = vmatpush1.bf16.msra.mxu0 0
    %586 = vmatprep.subr.bf16.mxu0 0
    %587 = vmatpush1.bf16.msra.mxu0 0
    %588 = vmatprep.subr.bf16.mxu0 0
    %589 = vmatpush1.bf16.msra.mxu0 0
    %590 = vmatprep.subr.bf16.mxu0 0
    %591 = vmatpush1.bf16.msra.mxu0 0
    %592 = vmatprep.subr.bf16.mxu0 0
    %593 = vmatpush1.bf16.msra.mxu0 0
    %594 = vmatprep.subr.bf16.mxu0 0
    %595 = vmatpush1.bf16.msra.mxu0 0
    %596 = vmatprep.subr.bf16.mxu0 0
    %597 = vmatpush1.bf16.msra.mxu0 0
    %598 = vmatprep.subr.bf16.mxu0 0
    %599 = vmatpush1.bf16.msra.mxu0 0
    %600 = vmatprep.mubr.bf16.mxu0 0
    %601 = vmatmul.mubr.bf16.gmra.mrb[0].mxu0 %v104
    %v602 = vpop.f32.mrb[0].mxu0
    %v603 = vadd.f32 0.0, %v602
    %v604 = vpop.f32.mrb[0].mxu0
    %v605 = vpop.f32.mrb[0].mxu0
    %v606 = vadd.f32 0.0, %v605
    %v607 = vpop.f32.mrb[0].mxu0
    %608 = vmatprep.mubr.bf16.mxu0 0
    %609 = vmatmul.mubr.bf16.gmra.mrb[0].mxu0 %v105
    %v610 = vpop.f32.mrb[0].mxu0
    %v611 = vadd.f32 0.0, %v610
    %v612 = vpop.f32.mrb[0].mxu0
    %v613 = vpop.f32.mrb[0].mxu0
    %v614 = vadd.f32 0.0, %v613
    %v615 = vpop.f32.mrb[0].mxu0
    %616 = vmatprep.mubr.bf16.mxu0 0
    %617 = vmatmul.mubr.bf16.gmra.mrb[0].mxu0 %v106
    %v618 = vpop.f32.mrb[0].mxu0
    %v619 = vadd.f32 0.0, %v618
    %v620 = vpop.f32.mrb[0].mxu0
    %v621 = vpop.f32.mrb[0].mxu0
    %v622 = vadd.f32 0.0, %v621
    %v623 = vpop.f32.mrb[0].mxu0
    %624 = vmatprep.mubr.bf16.mxu0 0
    %625 = vmatmul.mubr.bf16.gmra.mrb[0].mxu0 %v107
    %v626 = vpop.f32.mrb[0].mxu0
    %v627 = vadd.f32 0.0, %v626
    %v628 = vpop.f32.mrb[0].mxu0
    %v629 = vpop.f32.mrb[0].mxu0
    %v630 = vadd.f32 0.0, %v629
    %v631 = vpop.f32.mrb[0].mxu0
    %632 = vmatprep.mubr.bf16.mxu0 0
    %633 = vmatmul.mubr.bf16.gmra.mrb[0].mxu0 %v108
    %v634 = vpop.f32.mrb[0].mxu0
    %v635 = vadd.f32 0.0, %v634
    %v636 = vpop.f32.mrb[0].mxu0
    %v637 = vpop.f32.mrb[0].mxu0
    %v638 = vadd.f32 0.0, %v637
    %v639 = vpop.f32.mrb[0].mxu0
    %640 = vmatprep.mubr.bf16.mxu0 0
    %641 = vmatmul.mubr.bf16.gmra.mrb[0].mxu0 %v109
    %v642 = vpop.f32.mrb[0].mxu0
    %v643 = vadd.f32 0.0, %v642
    %v644 = vpop.f32.mrb[0].mxu0
    %v645 = vpop.f32.mrb[0].mxu0
    %v646 = vadd.f32 0.0, %v645
    %v647 = vpop.f32.mrb[0].mxu0
    %648 = vmatprep.mubr.bf16.mxu0 0
    %649 = vmatmul.mubr.bf16.gmra.mrb[0].mxu0 %v110
    %v650 = vpop.f32.mrb[0].mxu0
    %v651 = vadd.f32 0.0, %v650
    %v652 = vpop.f32.mrb[0].mxu0
    %v653 = vpop.f32.mrb[0].mxu0
    %v654 = vadd.f32 0.0, %v653
    %v655 = vpop.f32.mrb[0].mxu0
    %656 = vmatprep.mubr.bf16.mxu0 0
    %657 = vmatmul.mubr.bf16.gmra.mrb[0].mxu0 %v111
    %v658 = vpop.f32.mrb[0].mxu0
    %v659 = vadd.f32 0.0, %v658
    %v660 = vpop.f32.mrb[0].mxu0
    %v661 = vpop.f32.mrb[0].mxu0
    %v662 = vadd.f32 0.0, %v661
    %v663 = vpop.f32.mrb[0].mxu0
    %664 = vdwg.mxu0
    %v665 = vpack.c.bf16 %v606, %v603
    %v666 = vpack.c.bf16 %v614, %v611
    %v667 = vpack.c.bf16 %v622, %v619
    %v668 = vpack.c.bf16 %v630, %v627
    %v669 = vpack.c.bf16 %v638, %v635
    %v670 = vpack.c.bf16 %v646, %v643
    %v671 = vpack.c.bf16 %v654, %v651
    %v672 = vpack.c.bf16 %v662, %v659
    %v689 = vunpack.c.l.b16 %v552
    %v690 = vunpack.c.l.b16 %v553
    %v691 = vunpack.c.l.b16 %v554
    %v692 = vunpack.c.l.b16 %v555
    %v693 = vunpack.c.l.b16 %v556
    %v694 = vunpack.c.l.b16 %v557
    %v695 = vunpack.c.l.b16 %v558
    %v696 = vunpack.c.l.b16 %v559
    %v697 = vunpack.c.l.b16 %v560
    %v698 = vunpack.c.l.b16 %v561
    %v699 = vunpack.c.l.b16 %v562
    %v700 = vunpack.c.l.b16 %v563
    %v701 = vunpack.c.l.b16 %v564
    %v702 = vunpack.c.l.b16 %v565
    %v703 = vunpack.c.l.b16 %v566
    %v704 = vunpack.c.l.b16 %v567
    %v705 = vpack.c.b16 %v690, %v689
    %v706 = vpack.c.b16 %v692, %v691
    %v707 = vpack.c.b16 %v694, %v693
    %v708 = vpack.c.b16 %v696, %v695
    %v709 = vpack.c.b16 %v698, %v697
    %v710 = vpack.c.b16 %v700, %v699
    %v711 = vpack.c.b16 %v702, %v701
    %v712 = vpack.c.b16 %v704, %v703
    %721 = vmatprep.subr.bf16.mxu0 0
    %722 = vmatpush1.bf16.msra.mxu0 %v705
    %723 = vmatprep.subr.bf16.mxu0 0
    %724 = vmatpush1.bf16.msra.mxu0 %v706
    %725 = vmatprep.subr.bf16.mxu0 0
    %726 = vmatpush1.bf16.msra.mxu0 %v707
    %727 = vmatprep.subr.bf16.mxu0 0
    %728 = vmatpush1.bf16.msra.mxu0 %v708
    %729 = vmatprep.subr.bf16.mxu0 0
    %730 = vmatpush1.bf16.msra.mxu0 %v709
    %731 = vmatprep.subr.bf16.mxu0 0
    %732 = vmatpush1.bf16.msra.mxu0 %v710
    %733 = vmatprep.subr.bf16.mxu0 0
    %734 = vmatpush1.bf16.msra.mxu0 %v711
    %735 = vmatprep.subr.bf16.mxu0 0
    %736 = vmatpush1.bf16.msra.mxu0 %v712
    %737 = vmatprep.subr.bf16.mxu0 0
    %738 = vmatpush1.bf16.msra.mxu0 0
    %739 = vmatprep.subr.bf16.mxu0 0
    %740 = vmatpush1.bf16.msra.mxu0 0
    %741 = vmatprep.subr.bf16.mxu0 0
    %742 = vmatpush1.bf16.msra.mxu0 0
    %743 = vmatprep.subr.bf16.mxu0 0
    %744 = vmatpush1.bf16.msra.mxu0 0
    %745 = vmatprep.subr.bf16.mxu0 0
    %746 = vmatpush1.bf16.msra.mxu0 0
    %747 = vmatprep.subr.bf16.mxu0 0
    %748 = vmatpush1.bf16.msra.mxu0 0
    %749 = vmatprep.subr.bf16.mxu0 0
    %750 = vmatpush1.bf16.msra.mxu0 0
    %751 = vmatprep.subr.bf16.mxu0 0
    %752 = vmatpush1.bf16.msra.mxu0 0
    %753 = vmatprep.mubr.bf16.mxu0 0
    %754 = vmatmul.mubr.bf16.gmra.mrb[0].mxu0 %v665
    %v755 = vpop.f32.mrb[0].mxu0
    %v756 = vadd.f32 0.0, %v755
    %v757 = vpop.f32.mrb[0].mxu0
    %v758 = vpop.f32.mrb[0].mxu0
    %v759 = vadd.f32 0.0, %v758
    %v760 = vpop.f32.mrb[0].mxu0
    %761 = vmatprep.mubr.bf16.mxu0 0
    %762 = vmatmul.mubr.bf16.gmra.mrb[0].mxu0 %v666
    %v763 = vpop.f32.mrb[0].mxu0
    %v764 = vadd.f32 0.0, %v763
    %v765 = vpop.f32.mrb[0].mxu0
    %v766 = vpop.f32.mrb[0].mxu0
    %v767 = vadd.f32 0.0, %v766
    %v768 = vpop.f32.mrb[0].mxu0
    %769 = vmatprep.mubr.bf16.mxu0 0
    %770 = vmatmul.mubr.bf16.gmra.mrb[0].mxu0 %v667
    %v771 = vpop.f32.mrb[0].mxu0
    %v772 = vadd.f32 0.0, %v771
    %v773 = vpop.f32.mrb[0].mxu0
    %v774 = vpop.f32.mrb[0].mxu0
    %v775 = vadd.f32 0.0, %v774
    %v776 = vpop.f32.mrb[0].mxu0
    %777 = vmatprep.mubr.bf16.mxu0 0
    %778 = vmatmul.mubr.bf16.gmra.mrb[0].mxu0 %v668
    %v779 = vpop.f32.mrb[0].mxu0
    %v780 = vadd.f32 0.0, %v779
    %v781 = vpop.f32.mrb[0].mxu0
    %v782 = vpop.f32.mrb[0].mxu0
    %v783 = vadd.f32 0.0, %v782
    %v784 = vpop.f32.mrb[0].mxu0
    %785 = vmatprep.mubr.bf16.mxu0 0
    %786 = vmatmul.mubr.bf16.gmra.mrb[0].mxu0 %v669
    %v787 = vpop.f32.mrb[0].mxu0
    %v788 = vadd.f32 0.0, %v787
    %v789 = vpop.f32.mrb[0].mxu0
    %v790 = vpop.f32.mrb[0].mxu0
    %v791 = vadd.f32 0.0, %v790
    %v792 = vpop.f32.mrb[0].mxu0
    %793 = vmatprep.mubr.bf16.mxu0 0
    %794 = vmatmul.mubr.bf16.gmra.mrb[0].mxu0 %v670
    %v795 = vpop.f32.mrb[0].mxu0
    %v796 = vadd.f32 0.0, %v795
    %v797 = vpop.f32.mrb[0].mxu0
    %v798 = vpop.f32.mrb[0].mxu0
    %v799 = vadd.f32 0.0, %v798
    %v800 = vpop.f32.mrb[0].mxu0
    %801 = vmatprep.mubr.bf16.mxu0 0
    %802 = vmatmul.mubr.bf16.gmra.mrb[0].mxu0 %v671
    %v803 = vpop.f32.mrb[0].mxu0
    %v804 = vadd.f32 0.0, %v803
    %v805 = vpop.f32.mrb[0].mxu0
    %v806 = vpop.f32.mrb[0].mxu0
    %v807 = vadd.f32 0.0, %v806
    %v808 = vpop.f32.mrb[0].mxu0
    %809 = vmatprep.mubr.bf16.mxu0 0
    %810 = vmatmul.mubr.bf16.gmra.mrb[0].mxu0 %v672
    %v811 = vpop.f32.mrb[0].mxu0
    %v812 = vadd.f32 0.0, %v811
    %v813 = vpop.f32.mrb[0].mxu0
    %v814 = vpop.f32.mrb[0].mxu0
    %v815 = vadd.f32 0.0, %v814
    %v816 = vpop.f32.mrb[0].mxu0
    %817 = vdwg.mxu0
    %s818 = scalar_lea.vmem %s4, 2
    %v819 = vld [vmem:[%s818] sm:$0x3]
    %v820 = vadd.f32 %v756, %v759
    %v821 = vadd.f32 %v820, %v764
    %v822 = vadd.f32 %v821, %v767
    %v823 = vadd.f32 %v822, %v772
    %v824 = vadd.f32 %v823, %v775
    %v825 = vadd.f32 %v824, %v780
    %v826 = vadd.f32 %v825, %v783
    %v827 = vadd.f32 %v826, %v788
    %v828 = vadd.f32 %v827, %v791
    %v829 = vadd.f32 %v828, %v796
    %v830 = vadd.f32 %v829, %v799
    %v831 = vadd.f32 %v830, %v804
    %v832 = vadd.f32 %v831, %v807
    %v833 = vadd.f32 %v832, %v812
    %v834 = vadd.f32 %v833, %v815
    %v835 = vrot.slane %v834, 4
    %v836 = vadd.f32 %v834, %v835
    %v837 = vrot.slane %v836, 2
    %v838 = vadd.f32 %v836, %v837
    %v839 = vrot.slane %v838, 1
    %v840 = vadd.f32 %v838, %v839
    %v841 = vmul.f32 %v840, %v429
    %v842 = vsub.f32 %v756, %v841
    %v843 = vsub.f32 %v759, %v841
    %v844 = vsub.f32 %v764, %v841
    %v845 = vsub.f32 %v767, %v841
    %v846 = vsub.f32 %v772, %v841
    %v847 = vsub.f32 %v775, %v841
    %v848 = vsub.f32 %v780, %v841
    %v849 = vsub.f32 %v783, %v841
    %v850 = vsub.f32 %v788, %v841
    %v851 = vsub.f32 %v791, %v841
    %v852 = vsub.f32 %v796, %v841
    %v853 = vsub.f32 %v799, %v841
    %v854 = vsub.f32 %v804, %v841
    %v855 = vsub.f32 %v807, %v841
    %v856 = vsub.f32 %v812, %v841
    %v857 = vsub.f32 %v815, %v841
    %v858 = vmul.f32 %v842, %v842
    %v859 = vmul.f32 %v843, %v843
    %v860 = vmul.f32 %v844, %v844
    %v861 = vmul.f32 %v845, %v845
    %v862 = vmul.f32 %v846, %v846
    %v863 = vmul.f32 %v847, %v847
    %v864 = vmul.f32 %v848, %v848
    %v865 = vmul.f32 %v849, %v849
    %v866 = vmul.f32 %v850, %v850
    %v867 = vmul.f32 %v851, %v851
    %v868 = vmul.f32 %v852, %v852
    %v869 = vmul.f32 %v853, %v853
    %v870 = vmul.f32 %v854, %v854
    %v871 = vmul.f32 %v855, %v855
    %v872 = vmul.f32 %v856, %v856
    %v873 = vmul.f32 %v857, %v857
    %v874 = vadd.f32 %v858, %v859
    %v875 = vadd.f32 %v874, %v860
    %v876 = vadd.f32 %v875, %v861
    %v877 = vadd.f32 %v876, %v862
    %v878 = vadd.f32 %v877, %v863
    %v879 = vadd.f32 %v878, %v864
    %v880 = vadd.f32 %v879, %v865
    %v881 = vadd.f32 %v880, %v866
    %v882 = vadd.f32 %v881, %v867
    %v883 = vadd.f32 %v882, %v868
    %v884 = vadd.f32 %v883, %v869
    %v885 = vadd.f32 %v884, %v870
    %v886 = vadd.f32 %v885, %v871
    %v887 = vadd.f32 %v886, %v872
    %v888 = vadd.f32 %v887, %v873
    %v889 = vrot.slane %v888, 4
    %v890 = vadd.f32 %v888, %v889
    %v891 = vrot.slane %v890, 2
    %v892 = vadd.f32 %v890, %v891
    %v893 = vrot.slane %v892, 1
    %v894 = vadd.f32 %v892, %v893
    %v895 = vmul.f32 %v894, %v429
    %v896 = vadd.f32 %v895, 1e-05
    %v897 = vrsqrt.pop %v896
    %v898 = vmul.f32 %v897, %v819
    %v899 = vlaneseq
    %v900 = vshrl.u32 %v899, 7
    %v901 = vsub.s32 0, %v900
    %v902 = vrot.slane %v898, %v901
    %v903 = vmul.f32 %v842, %v902
    %v904 = vmul.f32 %v843, %v902
    %v905 = vmul.f32 %v844, %v902
    %v906 = vmul.f32 %v845, %v902
    %v907 = vmul.f32 %v846, %v902
    %v908 = vmul.f32 %v847, %v902
    %v909 = vmul.f32 %v848, %v902
    %v910 = vmul.f32 %v849, %v902
    %v911 = vmul.f32 %v850, %v902
    %v912 = vmul.f32 %v851, %v902
    %v913 = vmul.f32 %v852, %v902
    %v914 = vmul.f32 %v853, %v902
    %v915 = vmul.f32 %v854, %v902
    %v916 = vmul.f32 %v855, %v902
    %v917 = vmul.f32 %v856, %v902
    %v918 = vmul.f32 %v857, %v902
    %v919 = vlaneseq
    %v920 = vshrl.u32 %v919, 7
    %v921 = vsub.s32 1, %v920
    %v922 = vrot.slane %v819, %v921
    %v923 = vadd.f32 %v903, %v922
    %v924 = vadd.f32 %v904, %v922
    %v925 = vadd.f32 %v905, %v922
    %v926 = vadd.f32 %v906, %v922
    %v927 = vadd.f32 %v907, %v922
    %v928 = vadd.f32 %v908, %v922
    %v929 = vadd.f32 %v909, %v922
    %v930 = vadd.f32 %v910, %v922
    %v931 = vadd.f32 %v911, %v922
    %v932 = vadd.f32 %v912, %v922
    %v933 = vadd.f32 %v913, %v922
    %v934 = vadd.f32 %v914, %v922
    %v935 = vadd.f32 %v915, %v922
    %v936 = vadd.f32 %v916, %v922
    %v937 = vadd.f32 %v917, %v922
    %v938 = vadd.f32 %v918, %v922
    %v939 = vmax.f32 %v923, 0.0
    %v940 = vmax.f32 %v924, 0.0
    %v941 = vmax.f32 %v925, 0.0
    %v942 = vmax.f32 %v926, 0.0
    %v943 = vmax.f32 %v927, 0.0
    %v944 = vmax.f32 %v928, 0.0
    %v945 = vmax.f32 %v929, 0.0
    %v946 = vmax.f32 %v930, 0.0
    %v947 = vmax.f32 %v931, 0.0
    %v948 = vmax.f32 %v932, 0.0
    %v949 = vmax.f32 %v933, 0.0
    %v950 = vmax.f32 %v934, 0.0
    %v951 = vmax.f32 %v935, 0.0
    %v952 = vmax.f32 %v936, 0.0
    %v953 = vmax.f32 %v937, 0.0
    %v954 = vmax.f32 %v938, 0.0
    %v955 = vpack.c.bf16 %v940, %v939
    %v956 = vpack.c.bf16 %v942, %v941
    %v957 = vpack.c.bf16 %v944, %v943
    %v958 = vpack.c.bf16 %v946, %v945
    %v959 = vpack.c.bf16 %v948, %v947
    %v960 = vpack.c.bf16 %v950, %v949
    %v961 = vpack.c.bf16 %v952, %v951
    %v962 = vpack.c.bf16 %v954, %v953
    %s963 = scalar_lea.vmem [#allocation2], 64
    %v964 = vld [vmem:[%s963] sm:$0xf]
    %v965 = vld [vmem:[%s963 + $0x4] sm:$0xf]
    %v966 = vld [vmem:[%s963 + $0x8] sm:$0xf]
    %v967 = vld [vmem:[%s963 + $0xc] sm:$0xf]
    %v968 = vld [vmem:[%s963 + $0x10] sm:$0xf]
    %v969 = vld [vmem:[%s963 + $0x14] sm:$0xf]
    %v970 = vld [vmem:[%s963 + $0x18] sm:$0xf]
    %v971 = vld [vmem:[%s963 + $0x1c] sm:$0xf]
    %v972 = vld [vmem:[%s963 + $0x20] sm:$0xf]
    %v973 = vld [vmem:[%s963 + $0x24] sm:$0xf]
    %v974 = vld [vmem:[%s963 + $0x28] sm:$0xf]
    %v975 = vld [vmem:[%s963 + $0x2c] sm:$0xf]
    %v976 = vld [vmem:[%s963 + $0x30] sm:$0xf]
    %v977 = vld [vmem:[%s963 + $0x34] sm:$0xf]
    %v978 = vld [vmem:[%s963 + $0x38] sm:$0xf]
    %v979 = vld [vmem:[%s963 + $0x3c] sm:$0xf]
    %980 = vmatprep.subr.bf16.mxu0 0
    %981 = vmatpush1.bf16.msra.mxu0 %v955
    %982 = vmatprep.subr.bf16.mxu0 0
    %983 = vmatpush1.bf16.msra.mxu0 %v956
    %984 = vmatprep.subr.bf16.mxu0 0
    %985 = vmatpush1.bf16.msra.mxu0 %v957
    %986 = vmatprep.subr.bf16.mxu0 0
    %987 = vmatpush1.bf16.msra.mxu0 %v958
    %988 = vmatprep.subr.bf16.mxu0 0
    %989 = vmatpush1.bf16.msra.mxu0 %v959
    %990 = vmatprep.subr.bf16.mxu0 0
    %991 = vmatpush1.bf16.msra.mxu0 %v960
    %992 = vmatprep.subr.bf16.mxu0 0
    %993 = vmatpush1.bf16.msra.mxu0 %v961
    %994 = vmatprep.subr.bf16.mxu0 0
    %995 = vmatpush1.bf16.msra.mxu0 %v962
    %996 = vmatprep.subr.bf16.mxu0 0
    %997 = vmatpush1.bf16.msra.mxu0 0
    %998 = vmatprep.subr.bf16.mxu0 0
    %999 = vmatpush1.bf16.msra.mxu0 0
    %1000 = vmatprep.subr.bf16.mxu0 0
    %1001 = vmatpush1.bf16.msra.mxu0 0
    %1002 = vmatprep.subr.bf16.mxu0 0
    %1003 = vmatpush1.bf16.msra.mxu0 0
    %1004 = vmatprep.subr.bf16.mxu0 0
    %1005 = vmatpush1.bf16.msra.mxu0 0
    %1006 = vmatprep.subr.bf16.mxu0 0
    %1007 = vmatpush1.bf16.msra.mxu0 0
    %1008 = vmatprep.subr.bf16.mxu0 0
    %1009 = vmatpush1.bf16.msra.mxu0 0
    %1010 = vmatprep.subr.bf16.mxu0 0
    %1011 = vmatpush1.bf16.msra.mxu0 0
    %1012 = vmatprep.mubr.bf16.mxu0 0
    %1013 = vmatmul.mubr.bf16.gmra.mrb[0].mxu0 %v104
    %v1014 = vpop.f32.mrb[0].mxu0
    %v1015 = vadd.f32 0.0, %v1014
    %v1016 = vpop.f32.mrb[0].mxu0
    %v1017 = vpop.f32.mrb[0].mxu0
    %v1018 = vadd.f32 0.0, %v1017
    %v1019 = vpop.f32.mrb[0].mxu0
    %1020 = vmatprep.mubr.bf16.mxu0 0
    %1021 = vmatmul.mubr.bf16.gmra.mrb[0].mxu0 %v105
    %v1022 = vpop.f32.mrb[0].mxu0
    %v1023 = vadd.f32 0.0, %v1022
    %v1024 = vpop.f32.mrb[0].mxu0
    %v1025 = vpop.f32.mrb[0].mxu0
    %v1026 = vadd.f32 0.0, %v1025
    %v1027 = vpop.f32.mrb[0].mxu0
    %1028 = vmatprep.mubr.bf16.mxu0 0
    %1029 = vmatmul.mubr.bf16.gmra.mrb[0].mxu0 %v106
    %v1030 = vpop.f32.mrb[0].mxu0
    %v1031 = vadd.f32 0.0, %v1030
    %v1032 = vpop.f32.mrb[0].mxu0
    %v1033 = vpop.f32.mrb[0].mxu0
    %v1034 = vadd.f32 0.0, %v1033
    %v1035 = vpop.f32.mrb[0].mxu0
    %1036 = vmatprep.mubr.bf16.mxu0 0
    %1037 = vmatmul.mubr.bf16.gmra.mrb[0].mxu0 %v107
    %v1038 = vpop.f32.mrb[0].mxu0
    %v1039 = vadd.f32 0.0, %v1038
    %v1040 = vpop.f32.mrb[0].mxu0
    %v1041 = vpop.f32.mrb[0].mxu0
    %v1042 = vadd.f32 0.0, %v1041
    %v1043 = vpop.f32.mrb[0].mxu0
    %1044 = vmatprep.mubr.bf16.mxu0 0
    %1045 = vmatmul.mubr.bf16.gmra.mrb[0].mxu0 %v108
    %v1046 = vpop.f32.mrb[0].mxu0
    %v1047 = vadd.f32 0.0, %v1046
    %v1048 = vpop.f32.mrb[0].mxu0
    %v1049 = vpop.f32.mrb[0].mxu0
    %v1050 = vadd.f32 0.0, %v1049
    %v1051 = vpop.f32.mrb[0].mxu0
    %1052 = vmatprep.mubr.bf16.mxu0 0
    %1053 = vmatmul.mubr.bf16.gmra.mrb[0].mxu0 %v109
    %v1054 = vpop.f32.mrb[0].mxu0
    %v1055 = vadd.f32 0.0, %v1054
    %v1056 = vpop.f32.mrb[0].mxu0
    %v1057 = vpop.f32.mrb[0].mxu0
    %v1058 = vadd.f32 0.0, %v1057
    %v1059 = vpop.f32.mrb[0].mxu0
    %1060 = vmatprep.mubr.bf16.mxu0 0
    %1061 = vmatmul.mubr.bf16.gmra.mrb[0].mxu0 %v110
    %v1062 = vpop.f32.mrb[0].mxu0
    %v1063 = vadd.f32 0.0, %v1062
    %v1064 = vpop.f32.mrb[0].mxu0
    %v1065 = vpop.f32.mrb[0].mxu0
    %v1066 = vadd.f32 0.0, %v1065
    %v1067 = vpop.f32.mrb[0].mxu0
    %1068 = vmatprep.mubr.bf16.mxu0 0
    %1069 = vmatmul.mubr.bf16.gmra.mrb[0].mxu0 %v111
    %v1070 = vpop.f32.mrb[0].mxu0
    %v1071 = vadd.f32 0.0, %v1070
    %v1072 = vpop.f32.mrb[0].mxu0
    %v1073 = vpop.f32.mrb[0].mxu0
    %v1074 = vadd.f32 0.0, %v1073
    %v1075 = vpop.f32.mrb[0].mxu0
    %1076 = vdwg.mxu0
    %v1077 = vpack.c.bf16 %v1018, %v1015
    %v1078 = vpack.c.bf16 %v1026, %v1023
    %v1079 = vpack.c.bf16 %v1034, %v1031
    %v1080 = vpack.c.bf16 %v1042, %v1039
    %v1081 = vpack.c.bf16 %v1050, %v1047
    %v1082 = vpack.c.bf16 %v1058, %v1055
    %v1083 = vpack.c.bf16 %v1066, %v1063
    %v1084 = vpack.c.bf16 %v1074, %v1071
    %v1101 = vunpack.c.l.b16 %v964
    %v1102 = vunpack.c.l.b16 %v965
    %v1103 = vunpack.c.l.b16 %v966
    %v1104 = vunpack.c.l.b16 %v967
    %v1105 = vunpack.c.l.b16 %v968
    %v1106 = vunpack.c.l.b16 %v969
    %v1107 = vunpack.c.l.b16 %v970
    %v1108 = vunpack.c.l.b16 %v971
    %v1109 = vunpack.c.l.b16 %v972
    %v1110 = vunpack.c.l.b16 %v973
    %v1111 = vunpack.c.l.b16 %v974
    %v1112 = vunpack.c.l.b16 %v975
    %v1113 = vunpack.c.l.b16 %v976
    %v1114 = vunpack.c.l.b16 %v977
    %v1115 = vunpack.c.l.b16 %v978
    %v1116 = vunpack.c.l.b16 %v979
    %v1117 = vpack.c.b16 %v1102, %v1101
    %v1118 = vpack.c.b16 %v1104, %v1103
    %v1119 = vpack.c.b16 %v1106, %v1105
    %v1120 = vpack.c.b16 %v1108, %v1107
    %v1121 = vpack.c.b16 %v1110, %v1109
    %v1122 = vpack.c.b16 %v1112, %v1111
    %v1123 = vpack.c.b16 %v1114, %v1113
    %v1124 = vpack.c.b16 %v1116, %v1115
    %1133 = vmatprep.subr.bf16.mxu0 0
    %1134 = vmatpush1.bf16.msra.mxu0 %v1117
    %1135 = vmatprep.subr.bf16.mxu0 0
    %1136 = vmatpush1.bf16.msra.mxu0 %v1118
    %1137 = vmatprep.subr.bf16.mxu0 0
    %1138 = vmatpush1.bf16.msra.mxu0 %v1119
    %1139 = vmatprep.subr.bf16.mxu0 0
    %1140 = vmatpush1.bf16.msra.mxu0 %v1120
    %1141 = vmatprep.subr.bf16.mxu0 0
    %1142 = vmatpush1.bf16.msra.mxu0 %v1121
    %1143 = vmatprep.subr.bf16.mxu0 0
    %1144 = vmatpush1.bf16.msra.mxu0 %v1122
    %1145 = vmatprep.subr.bf16.mxu0 0
    %1146 = vmatpush1.bf16.msra.mxu0 %v1123
    %1147 = vmatprep.subr.bf16.mxu0 0
    %1148 = vmatpush1.bf16.msra.mxu0 %v1124
    %1149 = vmatprep.subr.bf16.mxu0 0
    %1150 = vmatpush1.bf16.msra.mxu0 0
    %1151 = vmatprep.subr.bf16.mxu0 0
    %1152 = vmatpush1.bf16.msra.mxu0 0
    %1153 = vmatprep.subr.bf16.mxu0 0
    %1154 = vmatpush1.bf16.msra.mxu0 0
    %1155 = vmatprep.subr.bf16.mxu0 0
    %1156 = vmatpush1.bf16.msra.mxu0 0
    %1157 = vmatprep.subr.bf16.mxu0 0
    %1158 = vmatpush1.bf16.msra.mxu0 0
    %1159 = vmatprep.subr.bf16.mxu0 0
    %1160 = vmatpush1.bf16.msra.mxu0 0
    %1161 = vmatprep.subr.bf16.mxu0 0
    %1162 = vmatpush1.bf16.msra.mxu0 0
    %1163 = vmatprep.subr.bf16.mxu0 0
    %1164 = vmatpush1.bf16.msra.mxu0 0
    %1165 = vmatprep.mubr.bf16.mxu0 0
    %1166 = vmatmul.mubr.bf16.gmra.mrb[0].mxu0 %v1077
    %v1167 = vpop.f32.mrb[0].mxu0
    %v1168 = vadd.f32 0.0, %v1167
    %v1169 = vpop.f32.mrb[0].mxu0
    %v1170 = vpop.f32.mrb[0].mxu0
    %v1171 = vadd.f32 0.0, %v1170
    %v1172 = vpop.f32.mrb[0].mxu0
    %1173 = vmatprep.mubr.bf16.mxu0 0
    %1174 = vmatmul.mubr.bf16.gmra.mrb[0].mxu0 %v1078
    %v1175 = vpop.f32.mrb[0].mxu0
    %v1176 = vadd.f32 0.0, %v1175
    %v1177 = vpop.f32.mrb[0].mxu0
    %v1178 = vpop.f32.mrb[0].mxu0
    %v1179 = vadd.f32 0.0, %v1178
    %v1180 = vpop.f32.mrb[0].mxu0
    %1181 = vmatprep.mubr.bf16.mxu0 0
    %1182 = vmatmul.mubr.bf16.gmra.mrb[0].mxu0 %v1079
    %v1183 = vpop.f32.mrb[0].mxu0
    %v1184 = vadd.f32 0.0, %v1183
    %v1185 = vpop.f32.mrb[0].mxu0
    %v1186 = vpop.f32.mrb[0].mxu0
    %v1187 = vadd.f32 0.0, %v1186
    %v1188 = vpop.f32.mrb[0].mxu0
    %1189 = vmatprep.mubr.bf16.mxu0 0
    %1190 = vmatmul.mubr.bf16.gmra.mrb[0].mxu0 %v1080
    %v1191 = vpop.f32.mrb[0].mxu0
    %v1192 = vadd.f32 0.0, %v1191
    %v1193 = vpop.f32.mrb[0].mxu0
    %v1194 = vpop.f32.mrb[0].mxu0
    %v1195 = vadd.f32 0.0, %v1194
    %v1196 = vpop.f32.mrb[0].mxu0
    %1197 = vmatprep.mubr.bf16.mxu0 0
    %1198 = vmatmul.mubr.bf16.gmra.mrb[0].mxu0 %v1081
    %v1199 = vpop.f32.mrb[0].mxu0
    %v1200 = vadd.f32 0.0, %v1199
    %v1201 = vpop.f32.mrb[0].mxu0
    %v1202 = vpop.f32.mrb[0].mxu0
    %v1203 = vadd.f32 0.0, %v1202
    %v1204 = vpop.f32.mrb[0].mxu0
    %1205 = vmatprep.mubr.bf16.mxu0 0
    %1206 = vmatmul.mubr.bf16.gmra.mrb[0].mxu0 %v1082
    %v1207 = vpop.f32.mrb[0].mxu0
    %v1208 = vadd.f32 0.0, %v1207
    %v1209 = vpop.f32.mrb[0].mxu0
    %v1210 = vpop.f32.mrb[0].mxu0
    %v1211 = vadd.f32 0.0, %v1210
    %v1212 = vpop.f32.mrb[0].mxu0
    %1213 = vmatprep.mubr.bf16.mxu0 0
    %1214 = vmatmul.mubr.bf16.gmra.mrb[0].mxu0 %v1083
    %v1215 = vpop.f32.mrb[0].mxu0
    %v1216 = vadd.f32 0.0, %v1215
    %v1217 = vpop.f32.mrb[0].mxu0
    %v1218 = vpop.f32.mrb[0].mxu0
    %v1219 = vadd.f32 0.0, %v1218
    %v1220 = vpop.f32.mrb[0].mxu0
    %1221 = vmatprep.mubr.bf16.mxu0 0
    %1222 = vmatmul.mubr.bf16.gmra.mrb[0].mxu0 %v1084
    %v1223 = vpop.f32.mrb[0].mxu0
    %v1224 = vadd.f32 0.0, %v1223
    %v1225 = vpop.f32.mrb[0].mxu0
    %v1226 = vpop.f32.mrb[0].mxu0
    %v1227 = vadd.f32 0.0, %v1226
    %v1228 = vpop.f32.mrb[0].mxu0
    %1229 = vdwg.mxu0
    %s1230 = scalar_lea.vmem %s4, 4
    %v1231 = vld [vmem:[%s1230] sm:$0x3]
    %v1232 = vadd.f32 %v1168, %v1171
    %v1233 = vadd.f32 %v1232, %v1176
    %v1234 = vadd.f32 %v1233, %v1179
    %v1235 = vadd.f32 %v1234, %v1184
    %v1236 = vadd.f32 %v1235, %v1187
    %v1237 = vadd.f32 %v1236, %v1192
    %v1238 = vadd.f32 %v1237, %v1195
    %v1239 = vadd.f32 %v1238, %v1200
    %v1240 = vadd.f32 %v1239, %v1203
    %v1241 = vadd.f32 %v1240, %v1208
    %v1242 = vadd.f32 %v1241, %v1211
    %v1243 = vadd.f32 %v1242, %v1216
    %v1244 = vadd.f32 %v1243, %v1219
    %v1245 = vadd.f32 %v1244, %v1224
    %v1246 = vadd.f32 %v1245, %v1227
    %v1247 = vrot.slane %v1246, 4
    %v1248 = vadd.f32 %v1246, %v1247
    %v1249 = vrot.slane %v1248, 2
    %v1250 = vadd.f32 %v1248, %v1249
    %v1251 = vrot.slane %v1250, 1
    %v1252 = vadd.f32 %v1250, %v1251
    %v1253 = vmul.f32 %v1252, %v429
    %v1254 = vsub.f32 %v1168, %v1253
    %v1255 = vsub.f32 %v1171, %v1253
    %v1256 = vsub.f32 %v1176, %v1253
    %v1257 = vsub.f32 %v1179, %v1253
    %v1258 = vsub.f32 %v1184, %v1253
    %v1259 = vsub.f32 %v1187, %v1253
    %v1260 = vsub.f32 %v1192, %v1253
    %v1261 = vsub.f32 %v1195, %v1253
    %v1262 = vsub.f32 %v1200, %v1253
    %v1263 = vsub.f32 %v1203, %v1253
    %v1264 = vsub.f32 %v1208, %v1253
    %v1265 = vsub.f32 %v1211, %v1253
    %v1266 = vsub.f32 %v1216, %v1253
    %v1267 = vsub.f32 %v1219, %v1253
    %v1268 = vsub.f32 %v1224, %v1253
    %v1269 = vsub.f32 %v1227, %v1253
    %v1270 = vmul.f32 %v1254, %v1254
    %v1271 = vmul.f32 %v1255, %v1255
    %v1272 = vmul.f32 %v1256, %v1256
    %v1273 = vmul.f32 %v1257, %v1257
    %v1274 = vmul.f32 %v1258, %v1258
    %v1275 = vmul.f32 %v1259, %v1259
    %v1276 = vmul.f32 %v1260, %v1260
    %v1277 = vmul.f32 %v1261, %v1261
    %v1278 = vmul.f32 %v1262, %v1262
    %v1279 = vmul.f32 %v1263, %v1263
    %v1280 = vmul.f32 %v1264, %v1264
    %v1281 = vmul.f32 %v1265, %v1265
    %v1282 = vmul.f32 %v1266, %v1266
    %v1283 = vmul.f32 %v1267, %v1267
    %v1284 = vmul.f32 %v1268, %v1268
    %v1285 = vmul.f32 %v1269, %v1269
    %v1286 = vadd.f32 %v1270, %v1271
    %v1287 = vadd.f32 %v1286, %v1272
    %v1288 = vadd.f32 %v1287, %v1273
    %v1289 = vadd.f32 %v1288, %v1274
    %v1290 = vadd.f32 %v1289, %v1275
    %v1291 = vadd.f32 %v1290, %v1276
    %v1292 = vadd.f32 %v1291, %v1277
    %v1293 = vadd.f32 %v1292, %v1278
    %v1294 = vadd.f32 %v1293, %v1279
    %v1295 = vadd.f32 %v1294, %v1280
    %v1296 = vadd.f32 %v1295, %v1281
    %v1297 = vadd.f32 %v1296, %v1282
    %v1298 = vadd.f32 %v1297, %v1283
    %v1299 = vadd.f32 %v1298, %v1284
    %v1300 = vadd.f32 %v1299, %v1285
    %v1301 = vrot.slane %v1300, 4
    %v1302 = vadd.f32 %v1300, %v1301
    %v1303 = vrot.slane %v1302, 2
    %v1304 = vadd.f32 %v1302, %v1303
    %v1305 = vrot.slane %v1304, 1
    %v1306 = vadd.f32 %v1304, %v1305
    %v1307 = vmul.f32 %v1306, %v429
    %v1308 = vadd.f32 %v1307, 1e-05
    %v1309 = vrsqrt.pop %v1308
    %v1310 = vmul.f32 %v1309, %v1231
    %v1311 = vlaneseq
    %v1312 = vshrl.u32 %v1311, 7
    %v1313 = vsub.s32 0, %v1312
    %v1314 = vrot.slane %v1310, %v1313
    %v1315 = vmul.f32 %v1254, %v1314
    %v1316 = vmul.f32 %v1255, %v1314
    %v1317 = vmul.f32 %v1256, %v1314
    %v1318 = vmul.f32 %v1257, %v1314
    %v1319 = vmul.f32 %v1258, %v1314
    %v1320 = vmul.f32 %v1259, %v1314
    %v1321 = vmul.f32 %v1260, %v1314
    %v1322 = vmul.f32 %v1261, %v1314
    %v1323 = vmul.f32 %v1262, %v1314
    %v1324 = vmul.f32 %v1263, %v1314
    %v1325 = vmul.f32 %v1264, %v1314
    %v1326 = vmul.f32 %v1265, %v1314
    %v1327 = vmul.f32 %v1266, %v1314
    %v1328 = vmul.f32 %v1267, %v1314
    %v1329 = vmul.f32 %v1268, %v1314
    %v1330 = vmul.f32 %v1269, %v1314
    %v1331 = vlaneseq
    %v1332 = vshrl.u32 %v1331, 7
    %v1333 = vsub.s32 1, %v1332
    %v1334 = vrot.slane %v1231, %v1333
    %v1335 = vadd.f32 %v1315, %v1334
    %v1336 = vadd.f32 %v1316, %v1334
    %v1337 = vadd.f32 %v1317, %v1334
    %v1338 = vadd.f32 %v1318, %v1334
    %v1339 = vadd.f32 %v1319, %v1334
    %v1340 = vadd.f32 %v1320, %v1334
    %v1341 = vadd.f32 %v1321, %v1334
    %v1342 = vadd.f32 %v1322, %v1334
    %v1343 = vadd.f32 %v1323, %v1334
    %v1344 = vadd.f32 %v1324, %v1334
    %v1345 = vadd.f32 %v1325, %v1334
    %v1346 = vadd.f32 %v1326, %v1334
    %v1347 = vadd.f32 %v1327, %v1334
    %v1348 = vadd.f32 %v1328, %v1334
    %v1349 = vadd.f32 %v1329, %v1334
    %v1350 = vadd.f32 %v1330, %v1334
    %1351 = vst [vmem:[#allocation5] sm:$0xff] %v1335
    %1352 = vst [vmem:[#allocation5 + $0x8] sm:$0xff] %v1336
    %1353 = vst [vmem:[#allocation5 + $0x10] sm:$0xff] %v1337
    %1354 = vst [vmem:[#allocation5 + $0x18] sm:$0xff] %v1338
    %1355 = vst [vmem:[#allocation5 + $0x20] sm:$0xff] %v1339
    %1356 = vst [vmem:[#allocation5 + $0x28] sm:$0xff] %v1340
    %1357 = vst [vmem:[#allocation5 + $0x30] sm:$0xff] %v1341
    %1358 = vst [vmem:[#allocation5 + $0x38] sm:$0xff] %v1342
    %1359 = vst [vmem:[#allocation5 + $0x40] sm:$0xff] %v1343
    %1360 = vst [vmem:[#allocation5 + $0x48] sm:$0xff] %v1344
    %1361 = vst [vmem:[#allocation5 + $0x50] sm:$0xff] %v1345
    %1362 = vst [vmem:[#allocation5 + $0x58] sm:$0xff] %v1346
    %1363 = vst [vmem:[#allocation5 + $0x60] sm:$0xff] %v1347
    %1364 = vst [vmem:[#allocation5 + $0x68] sm:$0xff] %v1348
    %1365 = vst [vmem:[#allocation5 + $0x70] sm:$0xff] %v1349
    %1366 = vst [vmem:[#allocation5 + $0x78] sm:$0xff] %v1350
    // Predicated region
    $region26: #{tpu_custom_call.1} parent=1 // pred_check
      _
    $region27: #{tpu_custom_call.1} parent=1 // pred_check_branch
      %1368 = sbr.rel (0) target = $region29
    $region28: #{tpu_custom_call.1} parent=1 // pred_region
      %s1370 = ssub.s32 2048, 2048
      %1371 = vsyncadd [#allocation4], %s1370
      %s1372 = sshll.u32 [#allocation5], 4
      %s1373 = int_to_ptr.vmem [resolvable:$true] %s1372
      %1378 = dma.vmem_to_hbm [thread:$0]  %s1373, 2048, %s5, [#allocation4], 128, 128, 8
    $region29: #{tpu_custom_call.1} parent=1 // pred_fallthru
      _
    // Predicated region
    $region30: #{tpu_custom_call.1} parent=1 // pred_check
      _
    $region31: #{tpu_custom_call.1} parent=1 // pred_check_branch
      %1380 = sbr.rel (0) target = $region33
    $region32: #{tpu_custom_call.1} parent=1 // pred_region
      %1381 = dma.done [#allocation4], 2048
    $region33: #{tpu_custom_call.1} parent=1 // pred_fallthru
      _
    %1382 = vsyncpa [#allocation3], 1
    %1383 = vsyncpa [#allocation4], 1

</llo_original>
